<compile_context>
chip_gen: v7x
topology: tpu7x:2x2x1
jax: 0.10.0
libtpu: 0.0.40
codegen_flags: <defaults>
</compile_context>

<pallas_src>
import jax
import jax.numpy as jnp
from jax import lax
from jax.experimental import pallas as pl
from jax.experimental.pallas import tpu as pltpu


_TILE_B = 512   # rows per grid step (HBM <-> VMEM DMA tile)
_SUB_B = 128    # rows per inner compute chunk (bounds h1/h2 vreg pressure)


def _round_up(n, m):
    return (n + m - 1) // m * m


def _mlp_kernel(x_ref, w1_ref, b1_ref, w2_ref, b2_ref, w3_ref, b3_ref, o_ref):
    tile_b = x_ref.shape[0]
    # If the tile is not a multiple of the sub-chunk (tiny batches), process it
    # in one shot; otherwise sweep 128-row sub-chunks to cap live intermediates.
    sub = _SUB_B if tile_b % _SUB_B == 0 else tile_b
    n_sub = tile_b // sub

    # Weights/biases are grid-resident; load once per grid step.
    w1 = w1_ref[...]; b1 = b1_ref[...]
    w2 = w2_ref[...]; b2 = b2_ref[...]
    w3 = w3_ref[...]; b3 = b3_ref[...]

    def body(s, carry):
        r = pl.multiple_of(s * sub, sub)
        xc = x_ref[pl.ds(r, sub), :]
        # Layer 1: (sub,15) @ (15,128) + b1 -> ReLU
        h1 = jnp.dot(xc, w1, preferred_element_type=jnp.float32)
        h1 = jnp.maximum(h1 + b1, 0.0)
        # Layer 2: (sub,128) @ (128,256) + b2 -> ReLU   (dominant FLOPs)
        h2 = jnp.dot(h1, w2, preferred_element_type=jnp.float32)
        h2 = jnp.maximum(h2 + b2, 0.0)
        # Layer 3: (sub,256) @ (256,64) + b3 -> ReLU
        h3 = jnp.dot(h2, w3, preferred_element_type=jnp.float32)
        h3 = jnp.maximum(h3 + b3, 0.0)
        o_ref[pl.ds(r, sub), :] = h3.astype(o_ref.dtype)
        return carry

    lax.fori_loop(0, n_sub, body, 0, unroll=True)


def global_info_encoder(x, params, tile_b=_TILE_B):
    """x: (B, 15) float32. params: dict of w1,b1,w2,b2,w3,b3 (W as (in,out))."""
    B, F = x.shape
    w1, b1 = params["w1"], params["b1"]
    w2, b2 = params["w2"], params["b2"]
    w3, b3 = params["w3"], params["b3"]
    out_dim = w3.shape[1]

    # Tile choice: full TILE_B for large batches; otherwise the whole batch
    # padded to a multiple of 8 (sublane granularity) in a single grid step.
    b8 = _round_up(B, 8)
    tb = tile_b if b8 >= tile_b else b8
    Bp = _round_up(B, tb)
    xp = x if Bp == B else jnp.pad(x, ((0, Bp - B), (0, 0)))

    grid = (Bp // tb,)

    def resident(a):
        # Full-array block, constant index_map -> stays in VMEM across grid.
        return pl.BlockSpec(a.shape, lambda i: (0,) * a.ndim)

    flops = 2 * Bp * (F * w1.shape[1]
                      + w2.shape[0] * w2.shape[1]
                      + w3.shape[0] * w3.shape[1])
    weight_bytes = sum(int(a.size) * a.dtype.itemsize
                       for a in (w1, b1, w2, b2, w3, b3))
    bytes_accessed = Bp * (F + out_dim) * 4 + weight_bytes

    out = pl.pallas_call(
        _mlp_kernel,
        out_shape=jax.ShapeDtypeStruct((Bp, out_dim), jnp.float32),
        grid_spec=pl.GridSpec(
            grid=grid,
            in_specs=[
                pl.BlockSpec((tb, F), lambda i: (i, 0)),
                resident(w1), resident(b1),
                resident(w2), resident(b2),
                resident(w3), resident(b3),
            ],
            out_specs=pl.BlockSpec((tb, out_dim), lambda i: (i, 0)),
        ),
        compiler_params=pltpu.CompilerParams(
            dimension_semantics=("parallel",),
        ),
        cost_estimate=pl.CostEstimate(
            flops=flops, transcendentals=0, bytes_accessed=bytes_accessed),
    )(xp, w1, b1, w2, b2, w3, b3)

    return out[:B] if Bp != B else out


def init_params(key):
    """Deterministic init mimicking torch.nn.Linear default (uniform ±1/sqrt(fan_in))."""
    dims = [(15, 128), (128, 256), (256, 64)]
    params = {}
    for i, (fin, fout) in enumerate(dims, start=1):
        key, kw, kb = jax.random.split(key, 3)
        bound = 1.0 / (fin ** 0.5)
        params[f"w{i}"] = jax.random.uniform(
            kw, (fin, fout), jnp.float32, minval=-bound, maxval=bound)
        params[f"b{i}"] = jax.random.uniform(
            kb, (1, fout), jnp.float32, minval=-bound, maxval=bound)
    return params


def reference_forward(x, params):
    h = x
    for i in (1, 2, 3):
        h = jnp.maximum(h @ params[f"w{i}"] + params[f"b{i}"], 0.0)
    return h


if __name__ == "__main__":
    key = jax.random.PRNGKey(0)
    kx, kx2, kp = jax.random.split(key, 3)
    params = init_params(kp)

    # Small batch (single grid step, sub-chunk == whole tile).
    B = 8
    x = jax.random.normal(kx, (B, 15), dtype=jnp.float32)
    out = jax.block_until_ready(global_info_encoder(x, params))
    ref = reference_forward(x, params)
    assert out.shape == (B, 64)
    assert jnp.allclose(out, ref, atol=1e-5, rtol=1e-5), "mismatch vs reference (B=8)"

    # Larger, non-multiple-of-tile batch: exercises padding, multi-step grid,
    # resident weights, and the inner 128-row sub-chunk loop.
    B2 = 600
    x2 = jax.random.normal(kx2, (B2, 15), dtype=jnp.float32)
    out2 = jax.block_until_ready(global_info_encoder(x2, params))
    ref2 = reference_forward(x2, params)
    assert out2.shape == (B2, 64)
    assert jnp.allclose(out2, ref2, atol=1e-5, rtol=1e-5), "mismatch vs reference (B=600)"

    print("KERNEL_OK")
</pallas_src>

<mosaic_0001>
module attributes {stable_mosaic.version = 11 : i64} {
  func.func @_mlp_kernel(%arg0: i32, %arg1: memref<8x15xf32, #tpu.memory_space<vmem>>, %arg2: memref<15x128xf32, #tpu.memory_space<vmem>>, %arg3: memref<1x128xf32, #tpu.memory_space<vmem>>, %arg4: memref<128x256xf32, #tpu.memory_space<vmem>>, %arg5: memref<1x256xf32, #tpu.memory_space<vmem>>, %arg6: memref<256x64xf32, #tpu.memory_space<vmem>>, %arg7: memref<1x64xf32, #tpu.memory_space<vmem>>, %arg8: memref<8x64xf32, #tpu.memory_space<vmem>>) attributes {dimension_semantics = [#tpu.dimension_semantics<parallel>], iteration_bounds = array<i64: 1>, scalar_prefetch = 0 : i64, scratch_operands = 0 : i64, tpu.core_type = #tpu.core_type<tc>, window_params = [{transform_indices = @transform_0, window_bounds = array<i64: 8, 15>}, {pipeline_mode = #tpu.pipeline_mode<synchronous>, transform_indices = @transform_1, window_bounds = array<i64: 15, 128>}, {pipeline_mode = #tpu.pipeline_mode<synchronous>, transform_indices = @transform_2, window_bounds = array<i64: 1, 128>}, {pipeline_mode = #tpu.pipeline_mode<synchronous>, transform_indices = @transform_3, window_bounds = array<i64: 128, 256>}, {pipeline_mode = #tpu.pipeline_mode<synchronous>, transform_indices = @transform_4, window_bounds = array<i64: 1, 256>}, {pipeline_mode = #tpu.pipeline_mode<synchronous>, transform_indices = @transform_5, window_bounds = array<i64: 256, 64>}, {pipeline_mode = #tpu.pipeline_mode<synchronous>, transform_indices = @transform_6, window_bounds = array<i64: 1, 64>}, {transform_indices = @transform_7, window_bounds = array<i64: 8, 64>}]} {
    %c0 = arith.constant 0 : index
    %c0_0 = arith.constant 0 : index
    %0 = vector.load %arg2[%c0, %c0_0] : memref<15x128xf32, #tpu.memory_space<vmem>>, vector<15x128xf32>
    %c0_1 = arith.constant 0 : index
    %c0_2 = arith.constant 0 : index
    %1 = vector.load %arg3[%c0_1, %c0_2] : memref<1x128xf32, #tpu.memory_space<vmem>>, vector<1x128xf32>
    %c0_3 = arith.constant 0 : index
    %c0_4 = arith.constant 0 : index
    %2 = vector.load %arg4[%c0_3, %c0_4] : memref<128x256xf32, #tpu.memory_space<vmem>>, vector<128x256xf32>
    %c0_5 = arith.constant 0 : index
    %c0_6 = arith.constant 0 : index
    %3 = vector.load %arg5[%c0_5, %c0_6] : memref<1x256xf32, #tpu.memory_space<vmem>>, vector<1x256xf32>
    %c0_7 = arith.constant 0 : index
    %c0_8 = arith.constant 0 : index
    %4 = vector.load %arg6[%c0_7, %c0_8] : memref<256x64xf32, #tpu.memory_space<vmem>>, vector<256x64xf32>
    %c0_9 = arith.constant 0 : index
    %c0_10 = arith.constant 0 : index
    %5 = vector.load %arg7[%c0_9, %c0_10] : memref<1x64xf32, #tpu.memory_space<vmem>>, vector<1x64xf32>
    %c0_i32 = arith.constant 0 : i32
    %c8_i32 = arith.constant 8 : i32
    %6 = arith.muli %c0_i32, %c8_i32 : i32
    %7 = tpu.assume_multiple %6, 8 : i32
    %8 = arith.index_cast %7 : i32 to index
    %c0_11 = arith.constant 0 : index
    %9 = vector.load %arg1[%8, %c0_11] : memref<8x15xf32, #tpu.memory_space<vmem>>, vector<8x15xf32>
    %cst = arith.constant dense<0.000000e+00> : vector<8x128xf32>
    %10 = tpu.matmul %9, %0, %cst {dimension_numbers = #tpu.dot_dimension_numbers<[1], [0], [0], [1], [0, 0, 1, 1], [], []>} : vector<8x15xf32>, vector<15x128xf32>, vector<8x128xf32> -> vector<8x128xf32>
    %11 = vector.broadcast %1 : vector<1x128xf32> to vector<8x128xf32>
    %12 = arith.addf %10, %11 : vector<8x128xf32>
    %cst_12 = arith.constant 0.000000e+00 : f32
    %13 = vector.broadcast %cst_12 : f32 to vector<8x128xf32>
    %14 = arith.maximumf %12, %13 : vector<8x128xf32>
    %cst_13 = arith.constant dense<0.000000e+00> : vector<8x256xf32>
    %15 = tpu.matmul %14, %2, %cst_13 {dimension_numbers = #tpu.dot_dimension_numbers<[1], [0], [0], [1], [0, 0, 1, 1], [], []>} : vector<8x128xf32>, vector<128x256xf32>, vector<8x256xf32> -> vector<8x256xf32>
    %16 = vector.broadcast %3 : vector<1x256xf32> to vector<8x256xf32>
    %17 = arith.addf %15, %16 : vector<8x256xf32>
    %cst_14 = arith.constant 0.000000e+00 : f32
    %18 = vector.broadcast %cst_14 : f32 to vector<8x256xf32>
    %19 = arith.maximumf %17, %18 : vector<8x256xf32>
    %cst_15 = arith.constant dense<0.000000e+00> : vector<8x64xf32>
    %20 = tpu.matmul %19, %4, %cst_15 {dimension_numbers = #tpu.dot_dimension_numbers<[1], [0], [0], [1], [0, 0, 1, 1], [], []>} : vector<8x256xf32>, vector<256x64xf32>, vector<8x64xf32> -> vector<8x64xf32>
    %21 = vector.broadcast %5 : vector<1x64xf32> to vector<8x64xf32>
    %22 = arith.addf %20, %21 : vector<8x64xf32>
    %cst_16 = arith.constant 0.000000e+00 : f32
    %23 = vector.broadcast %cst_16 : f32 to vector<8x64xf32>
    %24 = arith.maximumf %22, %23 : vector<8x64xf32>
    %25 = arith.index_cast %7 : i32 to index
    %c0_17 = arith.constant 0 : index
    %26 = vector.load %arg8[%25, %c0_17] : memref<8x64xf32, #tpu.memory_space<vmem>>, vector<8x64xf32>
    tpu.vector_store %arg8[%25, %c0_17], %24 {strides = array<i32>} : memref<8x64xf32, #tpu.memory_space<vmem>>, vector<8x64xf32>,
    %c1_i32 = arith.constant 1 : i32
    return
  }
  func.func @transform_0(%arg0: i32) -> (i32, i32) {
    %c0_i32 = arith.constant 0 : i32
    %c0_i32_0 = arith.constant 0 : i32
    return %arg0, %c0_i32 : i32, i32
  }
  func.func @transform_1(%arg0: i32) -> (i32, i32) {
    %c0_i32 = arith.constant 0 : i32
    %c0_i32_0 = arith.constant 0 : i32
    %c0_i32_1 = arith.constant 0 : i32
    return %c0_i32, %c0_i32_0 : i32, i32
  }
  func.func @transform_2(%arg0: i32) -> (i32, i32) {
    %c0_i32 = arith.constant 0 : i32
    %c0_i32_0 = arith.constant 0 : i32
    %c0_i32_1 = arith.constant 0 : i32
    return %c0_i32, %c0_i32_0 : i32, i32
  }
  func.func @transform_3(%arg0: i32) -> (i32, i32) {
    %c0_i32 = arith.constant 0 : i32
    %c0_i32_0 = arith.constant 0 : i32
    %c0_i32_1 = arith.constant 0 : i32
    return %c0_i32, %c0_i32_0 : i32, i32
  }
  func.func @transform_4(%arg0: i32) -> (i32, i32) {
    %c0_i32 = arith.constant 0 : i32
    %c0_i32_0 = arith.constant 0 : i32
    %c0_i32_1 = arith.constant 0 : i32
    return %c0_i32, %c0_i32_0 : i32, i32
  }
  func.func @transform_5(%arg0: i32) -> (i32, i32) {
    %c0_i32 = arith.constant 0 : i32
    %c0_i32_0 = arith.constant 0 : i32
    %c0_i32_1 = arith.constant 0 : i32
    return %c0_i32, %c0_i32_0 : i32, i32
  }
  func.func @transform_6(%arg0: i32) -> (i32, i32) {
    %c0_i32 = arith.constant 0 : i32
    %c0_i32_0 = arith.constant 0 : i32
    %c0_i32_1 = arith.constant 0 : i32
    return %c0_i32, %c0_i32_0 : i32, i32
  }
  func.func @transform_7(%arg0: i32) -> (i32, i32) {
    %c0_i32 = arith.constant 0 : i32
    %c0_i32_0 = arith.constant 0 : i32
    return %arg0, %c0_i32 : i32, i32
  }
}

</mosaic_0001>

<llo_original>
// kernel: tpu_custom_call.1
$region0: #{tpu_custom_call.1}
  #allocation0 [shape = 'u32[]', space=smem, size = 0x4, offset = 0x4, fixed_abs, tag = 'smem constant byte address 0x4 - core index']
  #allocation1 [shape = 'u32[144,128]{1,0:T(1,128)}', space=vmem, size = 0x12000, scoped, tag = 'internal scratch']
  %s0 = inlined_call_operand.vmem [shape: f32[8,15], index: 0, kind: input, shape index: {}]
  %s1 = inlined_call_operand.vmem [shape: f32[15,128], index: 1, kind: input, shape index: {}]
  %s2 = inlined_call_operand.vmem [shape: f32[1,128], index: 2, kind: input, shape index: {}]
  %s3 = inlined_call_operand.vmem [shape: f32[128,256], index: 3, kind: input, shape index: {}]
  %s4 = inlined_call_operand.vmem [shape: f32[1,256], index: 4, kind: input, shape index: {}]
  %s5 = inlined_call_operand.vmem [shape: f32[256,64], index: 5, kind: input, shape index: {}]
  %s6 = inlined_call_operand.vmem [shape: f32[1,64], index: 6, kind: input, shape index: {}]
  %s7 = inlined_call_operand.hbm [shape: f32[8,64], index: 7, kind: output, shape index: {}]
  %s8 = sld [smem:[#allocation0]]
  $region38: #{tpu_custom_call.1} parent=0
    _
  %s10 = ssub.s32 1, %s8
  %s11 = scalar_select 0, %s10, %s8
  $region1: #{tpu_custom_call.1} parent=0
    #allocation2 [shape = 'u8[4096]{0}', space=vmem, size = 0x1000, scoped, tag = 'output window, operand 0, single buffered']
    #allocation3 [shape = 's32[1]{0}', space=sflag, size = 0x4, scoped, tag = 'scoped memory for tpu_custom_call.1']
    %12 = vsyncpa [#allocation3], 0
    // Predicated region
    $region2: #{tpu_custom_call.1} parent=1 // pred_check
      _
    $region3: #{tpu_custom_call.1} parent=1 // pred_check_branch
      %14 = sbr.rel (0) target = $region5
    $region4: #{tpu_custom_call.1} parent=1 // pred_region
      _
    $region5: #{tpu_custom_call.1} parent=1 // pred_fallthru
      _
    // Predicated region
    $region6: #{tpu_custom_call.1} parent=1 // pred_check
      _
    $region7: #{tpu_custom_call.1} parent=1 // pred_check_branch
      %16 = sbr.rel (0) target = $region9
    $region8: #{tpu_custom_call.1} parent=1 // pred_region
      _
    $region9: #{tpu_custom_call.1} parent=1 // pred_fallthru
      _
    // Predicated region
    $region10: #{tpu_custom_call.1} parent=1 // pred_check
      _
    $region11: #{tpu_custom_call.1} parent=1 // pred_check_branch
      %18 = sbr.rel (0) target = $region13
    $region12: #{tpu_custom_call.1} parent=1 // pred_region
      _
    $region13: #{tpu_custom_call.1} parent=1 // pred_fallthru
      _
    // Predicated region
    $region14: #{tpu_custom_call.1} parent=1 // pred_check
      _
    $region15: #{tpu_custom_call.1} parent=1 // pred_check_branch
      %20 = sbr.rel (0) target = $region17
    $region16: #{tpu_custom_call.1} parent=1 // pred_region
      _
    $region17: #{tpu_custom_call.1} parent=1 // pred_fallthru
      _
    // Predicated region
    $region18: #{tpu_custom_call.1} parent=1 // pred_check
      _
    $region19: #{tpu_custom_call.1} parent=1 // pred_check_branch
      %22 = sbr.rel (0) target = $region21
    $region20: #{tpu_custom_call.1} parent=1 // pred_region
      _
    $region21: #{tpu_custom_call.1} parent=1 // pred_fallthru
      _
    // Predicated region
    $region22: #{tpu_custom_call.1} parent=1 // pred_check
      _
    $region23: #{tpu_custom_call.1} parent=1 // pred_check_branch
      %24 = sbr.rel (0) target = $region25
    $region24: #{tpu_custom_call.1} parent=1 // pred_region
      _
    $region25: #{tpu_custom_call.1} parent=1 // pred_fallthru
      _
    // Predicated region
    $region26: #{tpu_custom_call.1} parent=1 // pred_check
      _
    $region27: #{tpu_custom_call.1} parent=1 // pred_check_branch
      %26 = sbr.rel (0) target = $region29
    $region28: #{tpu_custom_call.1} parent=1 // pred_region
      _
    $region29: #{tpu_custom_call.1} parent=1 // pred_fallthru
      _
    %v27 = vld [vmem:[%s1] sm:$0xff]
    %v28 = vld [vmem:[%s1 + $0x8] sm:$0x7f]
    %v29 = vld [vmem:[%s2] sm:$0x1]
    %v30 = vld [vmem:[%s3] sm:$0xff]
    %v31 = vld [vmem:[%s3 + $0x8] sm:$0xff]
    %v32 = vld [vmem:[%s3 + $0x10] sm:$0xff]
    %v33 = vld [vmem:[%s3 + $0x18] sm:$0xff]
    %v34 = vld [vmem:[%s3 + $0x20] sm:$0xff]
    %v35 = vld [vmem:[%s3 + $0x28] sm:$0xff]
    %v36 = vld [vmem:[%s3 + $0x30] sm:$0xff]
    %v37 = vld [vmem:[%s3 + $0x38] sm:$0xff]
    %v38 = vld [vmem:[%s3 + $0x40] sm:$0xff]
    %v39 = vld [vmem:[%s3 + $0x48] sm:$0xff]
    %v40 = vld [vmem:[%s3 + $0x50] sm:$0xff]
    %v41 = vld [vmem:[%s3 + $0x58] sm:$0xff]
    %v42 = vld [vmem:[%s3 + $0x60] sm:$0xff]
    %v43 = vld [vmem:[%s3 + $0x68] sm:$0xff]
    %v44 = vld [vmem:[%s3 + $0x70] sm:$0xff]
    %v45 = vld [vmem:[%s3 + $0x78] sm:$0xff]
    %v46 = vld [vmem:[%s3 + $0x80] sm:$0xff]
    %v47 = vld [vmem:[%s3 + $0x88] sm:$0xff]
    %v48 = vld [vmem:[%s3 + $0x90] sm:$0xff]
    %v49 = vld [vmem:[%s3 + $0x98] sm:$0xff]
    %v50 = vld [vmem:[%s3 + $0xa0] sm:$0xff]
    %v51 = vld [vmem:[%s3 + $0xa8] sm:$0xff]
    %v52 = vld [vmem:[%s3 + $0xb0] sm:$0xff]
    %v53 = vld [vmem:[%s3 + $0xb8] sm:$0xff]
    %v54 = vld [vmem:[%s3 + $0xc0] sm:$0xff]
    %v55 = vld [vmem:[%s3 + $0xc8] sm:$0xff]
    %v56 = vld [vmem:[%s3 + $0xd0] sm:$0xff]
    %v57 = vld [vmem:[%s3 + $0xd8] sm:$0xff]
    %v58 = vld [vmem:[%s3 + $0xe0] sm:$0xff]
    %v59 = vld [vmem:[%s3 + $0xe8] sm:$0xff]
    %v60 = vld [vmem:[%s3 + $0xf0] sm:$0xff]
    %v61 = vld [vmem:[%s3 + $0xf8] sm:$0xff]
    %v62 = vld [vmem:[%s4] sm:$0x3]
    %v63 = vld [vmem:[%s5] sm:$0xff]
    %v64 = vld [vmem:[%s5 + $0x8] sm:$0xff]
    %v65 = vld [vmem:[%s5 + $0x10] sm:$0xff]
    %v66 = vld [vmem:[%s5 + $0x18] sm:$0xff]
    %v67 = vld [vmem:[%s5 + $0x20] sm:$0xff]
    %v68 = vld [vmem:[%s5 + $0x28] sm:$0xff]
    %v69 = vld [vmem:[%s5 + $0x30] sm:$0xff]
    %v70 = vld [vmem:[%s5 + $0x38] sm:$0xff]
    %v71 = vld [vmem:[%s5 + $0x40] sm:$0xff]
    %v72 = vld [vmem:[%s5 + $0x48] sm:$0xff]
    %v73 = vld [vmem:[%s5 + $0x50] sm:$0xff]
    %v74 = vld [vmem:[%s5 + $0x58] sm:$0xff]
    %v75 = vld [vmem:[%s5 + $0x60] sm:$0xff]
    %v76 = vld [vmem:[%s5 + $0x68] sm:$0xff]
    %v77 = vld [vmem:[%s5 + $0x70] sm:$0xff]
    %v78 = vld [vmem:[%s5 + $0x78] sm:$0xff]
    %v79 = vld [vmem:[%s5 + $0x80] sm:$0xff]
    %v80 = vld [vmem:[%s5 + $0x88] sm:$0xff]
    %v81 = vld [vmem:[%s5 + $0x90] sm:$0xff]
    %v82 = vld [vmem:[%s5 + $0x98] sm:$0xff]
    %v83 = vld [vmem:[%s5 + $0xa0] sm:$0xff]
    %v84 = vld [vmem:[%s5 + $0xa8] sm:$0xff]
    %v85 = vld [vmem:[%s5 + $0xb0] sm:$0xff]
    %v86 = vld [vmem:[%s5 + $0xb8] sm:$0xff]
    %v87 = vld [vmem:[%s5 + $0xc0] sm:$0xff]
    %v88 = vld [vmem:[%s5 + $0xc8] sm:$0xff]
    %v89 = vld [vmem:[%s5 + $0xd0] sm:$0xff]
    %v90 = vld [vmem:[%s5 + $0xd8] sm:$0xff]
    %v91 = vld [vmem:[%s5 + $0xe0] sm:$0xff]
    %v92 = vld [vmem:[%s5 + $0xe8] sm:$0xff]
    %v93 = vld [vmem:[%s5 + $0xf0] sm:$0xff]
    %v94 = vld [vmem:[%s5 + $0xf8] sm:$0xff]
    %v95 = vld [vmem:[%s6] sm:$0x1]
    %v96 = vld [vmem:[%s0] sm:$0xff]
    %v98 = vlaneseq
    %v99 = vshrl.u32 %v98, 7
    %v100 = vsub.s32 0, %v99
    %v101 = vrot.slane %v29, %v100
    %vm103 = vcmask 121856
    %v105 = vsel %vm103, %v96, 0
    %vm107 = vcmask 1046528
    %v109 = vsel %vm107, %v28, 0
    %111 = vmatprep.subr.mxu0 0.0
    %112 = vmatpush1.msra.mxu0 %v27
    %113 = vmatprep.subr.mxu0 0.0
    %114 = vmatpush1.msra.mxu0 %v109
    %115 = vmatprep.subr.mxu0 0.0
    %116 = vmatpush1.msra.mxu0 0.0
    %117 = vmatprep.subr.mxu0 0.0
    %118 = vmatpush1.msra.mxu0 0.0
    %119 = vmatprep.subr.mxu0 0.0
    %120 = vmatpush1.msra.mxu0 0.0
    %121 = vmatprep.subr.mxu0 0.0
    %122 = vmatpush1.msra.mxu0 0.0
    %123 = vmatprep.subr.mxu0 0.0
    %124 = vmatpush1.msra.mxu0 0.0
    %125 = vmatprep.subr.mxu0 0.0
    %126 = vmatpush1.msra.mxu0 0.0
    %127 = vmatprep.subr.mxu0 0.0
    %128 = vmatpush1.msra.mxu0 0.0
    %129 = vmatprep.subr.mxu0 0.0
    %130 = vmatpush1.msra.mxu0 0.0
    %131 = vmatprep.subr.mxu0 0.0
    %132 = vmatpush1.msra.mxu0 0.0
    %133 = vmatprep.subr.mxu0 0.0
    %134 = vmatpush1.msra.mxu0 0.0
    %135 = vmatprep.subr.mxu0 0.0
    %136 = vmatpush1.msra.mxu0 0.0
    %137 = vmatprep.subr.mxu0 0.0
    %138 = vmatpush1.msra.mxu0 0.0
    %139 = vmatprep.subr.mxu0 0.0
    %140 = vmatpush1.msra.mxu0 0.0
    %141 = vmatprep.subr.mxu0 0.0
    %142 = vmatpush1.msra.mxu0 0.0
    %143 = vmatprep.subr.mxu0 0.0
    %144 = vmatpush1.msra.mxu0 0.0
    %145 = vmatprep.subr.mxu0 0.0
    %146 = vmatpush1.msra.mxu0 0.0
    %147 = vmatprep.subr.mxu0 0.0
    %148 = vmatpush1.msra.mxu0 0.0
    %149 = vmatprep.subr.mxu0 0.0
    %150 = vmatpush1.msra.mxu0 0.0
    %151 = vmatprep.subr.mxu0 0.0
    %152 = vmatpush1.msra.mxu0 0.0
    %153 = vmatprep.subr.mxu0 0.0
    %154 = vmatpush1.msra.mxu0 0.0
    %155 = vmatprep.subr.mxu0 0.0
    %156 = vmatpush1.msra.mxu0 0.0
    %157 = vmatprep.subr.mxu0 0.0
    %158 = vmatpush1.msra.mxu0 0.0
    %159 = vmatprep.subr.mxu0 0.0
    %160 = vmatpush1.msra.mxu0 0.0
    %161 = vmatprep.subr.mxu0 0.0
    %162 = vmatpush1.msra.mxu0 0.0
    %163 = vmatprep.subr.mxu0 0.0
    %164 = vmatpush1.msra.mxu0 0.0
    %165 = vmatprep.subr.mxu0 0.0
    %166 = vmatpush1.msra.mxu0 0.0
    %167 = vmatprep.subr.mxu0 0.0
    %168 = vmatpush1.msra.mxu0 0.0
    %169 = vmatprep.subr.mxu0 0.0
    %170 = vmatpush1.msra.mxu0 0.0
    %171 = vmatprep.subr.mxu0 0.0
    %172 = vmatpush1.msra.mxu0 0.0
    %173 = vmatprep.subr.mxu0 0.0
    %174 = vmatpush1.msra.mxu0 0.0
    %175 = vmatprep.mubr.f32.mxu0 0.0
    %176 = vmatmul.mubr.f32.gmra.mrb[0].mxu0 %v105
    %v177 = vpop.f32.mrb[0].mxu0
    %v178 = vadd.f32 %v101, %v177
    %v179 = vpop.f32.mrb[0].mxu0
    %180 = vdwg.mxu0
    %v181 = vmax.f32 %v178, 0.0
    %v183 = vlaneseq
    %v184 = vshrl.u32 %v183, 7
    %v185 = vsub.s32 0, %v184
    %v186 = vrot.slane %v62, %v185
    %v187 = vlaneseq
    %v188 = vshrl.u32 %v187, 7
    %v189 = vsub.s32 1, %v188
    %v190 = vrot.slane %v62, %v189
    %193 = vmatprep.subr.mxu0 %v31
    %194 = vmatpush1.msra.mxu0 %v30
    %195 = vmatprep.subr.mxu0 %v33
    %196 = vmatpush1.msra.mxu0 %v32
    %197 = vmatprep.subr.mxu0 %v35
    %198 = vmatpush1.msra.mxu0 %v34
    %199 = vmatprep.subr.mxu0 %v37
    %200 = vmatpush1.msra.mxu0 %v36
    %201 = vmatprep.subr.mxu0 %v39
    %202 = vmatpush1.msra.mxu0 %v38
    %203 = vmatprep.subr.mxu0 %v41
    %204 = vmatpush1.msra.mxu0 %v40
    %205 = vmatprep.subr.mxu0 %v43
    %206 = vmatpush1.msra.mxu0 %v42
    %207 = vmatprep.subr.mxu0 %v45
    %208 = vmatpush1.msra.mxu0 %v44
    %209 = vmatprep.subr.mxu0 %v47
    %210 = vmatpush1.msra.mxu0 %v46
    %211 = vmatprep.subr.mxu0 %v49
    %212 = vmatpush1.msra.mxu0 %v48
    %213 = vmatprep.subr.mxu0 %v51
    %214 = vmatpush1.msra.mxu0 %v50
    %215 = vmatprep.subr.mxu0 %v53
    %216 = vmatpush1.msra.mxu0 %v52
    %217 = vmatprep.subr.mxu0 %v55
    %218 = vmatpush1.msra.mxu0 %v54
    %219 = vmatprep.subr.mxu0 %v57
    %220 = vmatpush1.msra.mxu0 %v56
    %221 = vmatprep.subr.mxu0 %v59
    %222 = vmatpush1.msra.mxu0 %v58
    %223 = vmatprep.subr.mxu0 %v61
    %224 = vmatpush1.msra.mxu0 %v60
    %225 = vmatprep.subr.mxu0 0.0
    %226 = vmatpush1.msra.mxu0 0.0
    %227 = vmatprep.subr.mxu0 0.0
    %228 = vmatpush1.msra.mxu0 0.0
    %229 = vmatprep.subr.mxu0 0.0
    %230 = vmatpush1.msra.mxu0 0.0
    %231 = vmatprep.subr.mxu0 0.0
    %232 = vmatpush1.msra.mxu0 0.0
    %233 = vmatprep.subr.mxu0 0.0
    %234 = vmatpush1.msra.mxu0 0.0
    %235 = vmatprep.subr.mxu0 0.0
    %236 = vmatpush1.msra.mxu0 0.0
    %237 = vmatprep.subr.mxu0 0.0
    %238 = vmatpush1.msra.mxu0 0.0
    %239 = vmatprep.subr.mxu0 0.0
    %240 = vmatpush1.msra.mxu0 0.0
    %241 = vmatprep.subr.mxu0 0.0
    %242 = vmatpush1.msra.mxu0 0.0
    %243 = vmatprep.subr.mxu0 0.0
    %244 = vmatpush1.msra.mxu0 0.0
    %245 = vmatprep.subr.mxu0 0.0
    %246 = vmatpush1.msra.mxu0 0.0
    %247 = vmatprep.subr.mxu0 0.0
    %248 = vmatpush1.msra.mxu0 0.0
    %249 = vmatprep.subr.mxu0 0.0
    %250 = vmatpush1.msra.mxu0 0.0
    %251 = vmatprep.subr.mxu0 0.0
    %252 = vmatpush1.msra.mxu0 0.0
    %253 = vmatprep.subr.mxu0 0.0
    %254 = vmatpush1.msra.mxu0 0.0
    %255 = vmatprep.subr.mxu0 0.0
    %256 = vmatpush1.msra.mxu0 0.0
    %257 = vmatprep.mubr.f32.mxu0 0.0
    %258 = vmatmul.mubr.f32.gmra.mrb[0].mxu0 %v181
    %v259 = vpop.f32.mrb[0].mxu0
    %v260 = vadd.f32 %v186, %v259
    %v261 = vpop.f32.mrb[0].mxu0
    %v262 = vadd.f32 %v190, %v261
    %263 = vdwg.mxu0
    %v264 = vmax.f32 %v260, 0.0
    %v265 = vmax.f32 %v262, 0.0
    %v267 = vlaneseq
    %v268 = vshrl.u32 %v267, 7
    %v269 = vsub.s32 0, %v268
    %v270 = vrot.slane %v95, %v269
    %272 = vmatprep.subr.mxu0 0.0
    %273 = vmatpush1.msra.mxu0 %v63
    %274 = vmatprep.subr.mxu0 0.0
    %275 = vmatpush1.msra.mxu0 %v64
    %276 = vmatprep.subr.mxu0 0.0
    %277 = vmatpush1.msra.mxu0 %v65
    %278 = vmatprep.subr.mxu0 0.0
    %279 = vmatpush1.msra.mxu0 %v66
    %280 = vmatprep.subr.mxu0 0.0
    %281 = vmatpush1.msra.mxu0 %v67
    %282 = vmatprep.subr.mxu0 0.0
    %283 = vmatpush1.msra.mxu0 %v68
    %284 = vmatprep.subr.mxu0 0.0
    %285 = vmatpush1.msra.mxu0 %v69
    %286 = vmatprep.subr.mxu0 0.0
    %287 = vmatpush1.msra.mxu0 %v70
    %288 = vmatprep.subr.mxu0 0.0
    %289 = vmatpush1.msra.mxu0 %v71
    %290 = vmatprep.subr.mxu0 0.0
    %291 = vmatpush1.msra.mxu0 %v72
    %292 = vmatprep.subr.mxu0 0.0
    %293 = vmatpush1.msra.mxu0 %v73
    %294 = vmatprep.subr.mxu0 0.0
    %295 = vmatpush1.msra.mxu0 %v74
    %296 = vmatprep.subr.mxu0 0.0
    %297 = vmatpush1.msra.mxu0 %v75
    %298 = vmatprep.subr.mxu0 0.0
    %299 = vmatpush1.msra.mxu0 %v76
    %300 = vmatprep.subr.mxu0 0.0
    %301 = vmatpush1.msra.mxu0 %v77
    %302 = vmatprep.subr.mxu0 0.0
    %303 = vmatpush1.msra.mxu0 %v78
    %304 = vmatprep.subr.mxu0 0.0
    %305 = vmatpush1.msra.mxu0 %v79
    %306 = vmatprep.subr.mxu0 0.0
    %307 = vmatpush1.msra.mxu0 %v80
    %308 = vmatprep.subr.mxu0 0.0
    %309 = vmatpush1.msra.mxu0 %v81
    %310 = vmatprep.subr.mxu0 0.0
    %311 = vmatpush1.msra.mxu0 %v82
    %312 = vmatprep.subr.mxu0 0.0
    %313 = vmatpush1.msra.mxu0 %v83
    %314 = vmatprep.subr.mxu0 0.0
    %315 = vmatpush1.msra.mxu0 %v84
    %316 = vmatprep.subr.mxu0 0.0
    %317 = vmatpush1.msra.mxu0 %v85
    %318 = vmatprep.subr.mxu0 0.0
    %319 = vmatpush1.msra.mxu0 %v86
    %320 = vmatprep.subr.mxu0 0.0
    %321 = vmatpush1.msra.mxu0 %v87
    %322 = vmatprep.subr.mxu0 0.0
    %323 = vmatpush1.msra.mxu0 %v88
    %324 = vmatprep.subr.mxu0 0.0
    %325 = vmatpush1.msra.mxu0 %v89
    %326 = vmatprep.subr.mxu0 0.0
    %327 = vmatpush1.msra.mxu0 %v90
    %328 = vmatprep.subr.mxu0 0.0
    %329 = vmatpush1.msra.mxu0 %v91
    %330 = vmatprep.subr.mxu0 0.0
    %331 = vmatpush1.msra.mxu0 %v92
    %332 = vmatprep.subr.mxu0 0.0
    %333 = vmatpush1.msra.mxu0 %v93
    %334 = vmatprep.subr.mxu0 0.0
    %335 = vmatpush1.msra.mxu0 %v94
    %336 = vmatprep.mubr.f32.mxu0 %v265
    %337 = vmatmul.mubr.f32.gmra.mrb[0].mxu0 %v264
    %v338 = vpop.f32.mrb[0].mxu0
    %v339 = vadd.f32 %v270, %v338
    %v340 = vpop.f32.mrb[0].mxu0
    %341 = vdwg.mxu0
    %v342 = vmax.f32 %v339, 0.0
    %vm343 = vcmask 523264
    %344 = vst.msk [vmem:[#allocation2] sm:$0xff] %vm343, %v342
    // Predicated region
    $region30: #{tpu_custom_call.1} parent=1 // pred_check
      _
    $region31: #{tpu_custom_call.1} parent=1 // pred_check_branch
      %346 = sbr.rel (0) target = $region33
    $region32: #{tpu_custom_call.1} parent=1 // pred_region
      %s348 = ssub.s32 128, 128
      %349 = vsyncadd [#allocation3], %s348
      %s351 = sshll.u32 [#allocation2], 4
      %s352 = int_to_ptr.vmem [resolvable:$true] %s351
      %354 = dma.vmem_to_hbm [thread:$0]  %s352, 128, %s7, [#allocation3]
    $region33: #{tpu_custom_call.1} parent=1 // pred_fallthru
      _
    // Predicated region
    $region34: #{tpu_custom_call.1} parent=1 // pred_check
      _
    $region35: #{tpu_custom_call.1} parent=1 // pred_check_branch
      %356 = sbr.rel (0) target = $region37
    $region36: #{tpu_custom_call.1} parent=1 // pred_region
      %357 = dma.done [#allocation3], 128
    $region37: #{tpu_custom_call.1} parent=1 // pred_fallthru
      _
    %358 = vsyncpa [#allocation3], 1

</llo_original>
